<compile_context>
chip_gen: v5e
topology: v5e:2x2
jax: 0.10.0
libtpu: 0.0.40
codegen_flags: <defaults>
</compile_context>

<pallas_src>
import jax
import jax.numpy as jnp
from jax.experimental import pallas as pl
from jax.experimental.pallas import tpu as pltpu

# Problem configuration (matches the nn.Module)
C_IN = 3
C_OUT = 6
KH = KW = 3
STRIDE = 1
PAD = 0
PATCH = KH * KW * C_IN          # 27 im2col rows
PATCH_PAD = 32                  # padded to a multiple of 8 sublanes (extra rows are zero)


def _make_conv_kernel(N, H, W, Hout, Wout):
    HW = H * W
    NHW = N * HW

    # Static safety check (review): wrap-around garbage from the lane-rolls must only ever
    # land on lanes that are never valid output positions.
    max_valid_q = (Hout - 1) * W + (Wout - 1)
    max_shift = (KH - 1) * W + (KW - 1)
    assert max_valid_q + max_shift < HW, (
        "roll wrap-around would corrupt valid output lanes for this geometry")

    def kernel(x_ref, w_ref, b_ref, o_ref, patches_ref):
        # x_ref:       (C_IN, N*HW)        channel-major activations
        # w_ref:       (C_OUT, PATCH_PAD)  (kh, kw, ci)-ordered weight, zero-padded cols
        # b_ref:       (C_OUT, 1)
        # o_ref:       (N, C_OUT, HW)      full-width output (compacted in the wrapper)
        # patches_ref: VMEM scratch (PATCH_PAD, N*HW) — batched im2col matrix
        x = x_ref[...]

        # Zero the scratch once so the padded rows (>= PATCH) contribute exactly 0.
        patches_ref[...] = jnp.zeros_like(patches_ref)

        # Build the batched im2col matrix one tap at a time (only one rolled tap live).
        # For tap (kh, kw) with shift s = kh*W + kw, lane q of the rolled slab holds
        # x[ci, q + s]; for every valid output lane q this stays inside the same image.
        for kh in range(KH):
            for kw in range(KW):
                s = kh * W + kw
                t = kh * KW + kw
                rolled = x if s == 0 else pltpu.roll(x, NHW - s, axis=1)
                patches_ref[t * C_IN:(t + 1) * C_IN, :] = rolled

        # One MXU matmul for the whole batch + one bias broadcast.
        acc = jnp.dot(w_ref[...], patches_ref[...],
                      preferred_element_type=jnp.float32) + b_ref[...]   # (C_OUT, N*HW)

        # Full-width, lane-aligned stores: per-image lane offset n*HW is a multiple of 128.
        for n in range(N):
            o_ref[n, :, :] = acc[:, n * HW:(n + 1) * HW].astype(o_ref.dtype)

    return kernel


def conv2d_pallas(x_nchw, weight, bias):
    """x_nchw: (N, C_IN, H, W); weight: (C_OUT, C_IN, KH, KW); bias: (C_OUT,)."""
    N, Cin, H, W = x_nchw.shape
    assert Cin == C_IN
    Hout = (H + 2 * PAD - KH) // STRIDE + 1
    Wout = (W + 2 * PAD - KW) // STRIDE + 1
    HW = H * W

    # Channel-major activations (C_IN, N*HW): a few-KiB transpose in XLA.
    x_cm = jnp.transpose(x_nchw.reshape(N, C_IN, HW), (1, 0, 2)).reshape(C_IN, N * HW)
    # Weight-only rearrangement (162 elements): (C_OUT,C_IN,KH,KW) -> (C_OUT, 27) in
    # (kh, kw, ci) order, zero-padded to PATCH_PAD columns to match the scratch rows.
    w_flat = jnp.transpose(weight, (0, 2, 3, 1)).reshape(C_OUT, PATCH)
    w_pad = jnp.pad(w_flat, ((0, 0), (0, PATCH_PAD - PATCH)))
    b_col = bias.reshape(C_OUT, 1)

    itemsize = jnp.dtype(x_nchw.dtype).itemsize
    cost = pl.CostEstimate(
        flops=2 * N * C_OUT * C_IN * KH * KW * Hout * Wout,
        transcendentals=0,
        bytes_accessed=(x_cm.size + w_pad.size + b_col.size + N * C_OUT * HW) * itemsize,
    )

    # Single invocation (no grid): every operand is a whole-array VMEM block.
    out_full = pl.pallas_call(
        _make_conv_kernel(N, H, W, Hout, Wout),
        out_shape=jax.ShapeDtypeStruct((N, C_OUT, HW), x_nchw.dtype),
        scratch_shapes=[pltpu.VMEM((PATCH_PAD, N * HW), jnp.float32)],
        cost_estimate=cost,
    )(x_cm, w_pad, b_col)

    # Compaction of the tiny full-width result in the wrapper: W -> Wout, H -> Hout.
    return out_full.reshape(N, C_OUT, H, W)[:, :, :Hout, :Wout]


if __name__ == "__main__":
    key = jax.random.PRNGKey(0)
    kx, kw, kb = jax.random.split(key, 3)

    # Small shapes consistent with the module: batch=2, 3 channels, 16x16 spatial.
    x = jax.random.normal(kx, (2, C_IN, 16, 16), dtype=jnp.float32)

    # Deterministic parameter init (PyTorch-style uniform bound = 1/sqrt(fan_in)).
    fan_in = C_IN * KH * KW
    bound = 1.0 / (fan_in ** 0.5)
    weight = jax.random.uniform(kw, (C_OUT, C_IN, KH, KW),
                                minval=-bound, maxval=bound, dtype=jnp.float32)
    bias = jax.random.uniform(kb, (C_OUT,),
                              minval=-bound, maxval=bound, dtype=jnp.float32)

    out = jax.jit(conv2d_pallas)(x, weight, bias)
    out = jax.block_until_ready(out)

    # Silent correctness check against XLA's native conv.
    ref = jax.lax.conv_general_dilated(
        x, weight, window_strides=(STRIDE, STRIDE), padding="VALID",
        dimension_numbers=("NCHW", "OIHW", "NCHW"),
    ) + bias.reshape(1, C_OUT, 1, 1)
    assert out.shape == (2, C_OUT, 14, 14)
    assert jnp.allclose(out, ref, atol=1e-4, rtol=1e-4)

    print("KERNEL_OK")
</pallas_src>

<mosaic_0001>
module attributes {stable_mosaic.version = 11 : i64} {
  func.func @kernel(%arg0: memref<3x512xf32, #tpu.memory_space<vmem>>, %arg1: memref<6x32xf32, #tpu.memory_space<vmem>>, %arg2: memref<6x1xf32, #tpu.memory_space<vmem>>, %arg3: memref<2x6x256xf32, #tpu.memory_space<vmem>>, %arg4: memref<32x512xf32, #tpu.memory_space<vmem>>) attributes {dimension_semantics = [], scalar_prefetch = 0 : i64, scratch_operands = 1 : i64, tpu.core_type = #tpu.core_type<tc>} {
    %c0 = arith.constant 0 : index
    %c0_0 = arith.constant 0 : index
    %0 = vector.load %arg0[%c0, %c0_0] : memref<3x512xf32, #tpu.memory_space<vmem>>, vector<3x512xf32>
    %cst = arith.constant 0.000000e+00 : f32
    %1 = vector.broadcast %cst : f32 to vector<32x512xf32>
    %c0_1 = arith.constant 0 : index
    %c0_2 = arith.constant 0 : index
    %2 = vector.load %arg4[%c0_1, %c0_2] : memref<32x512xf32, #tpu.memory_space<vmem>>, vector<32x512xf32>
    tpu.vector_store %arg4[%c0_1, %c0_2], %1 {strides = array<i32>} : memref<32x512xf32, #tpu.memory_space<vmem>>, vector<32x512xf32>,
    %c0_3 = arith.constant 0 : index
    %c0_4 = arith.constant 0 : index
    %3 = vector.load %arg4[%c0_3, %c0_4] : memref<32x512xf32, #tpu.memory_space<vmem>>, vector<3x512xf32>
    tpu.vector_store %arg4[%c0_3, %c0_4], %0 {strides = array<i32>} : memref<32x512xf32, #tpu.memory_space<vmem>>, vector<3x512xf32>,
    %c511_i32 = arith.constant 511 : i32
    %4 = tpu.dynamic_rotate %0 by %c511_i32 dim 1 : vector<3x512xf32>, i32 -> vector<3x512xf32>
    %c3 = arith.constant 3 : index
    %c0_5 = arith.constant 0 : index
    %5 = vector.load %arg4[%c3, %c0_5] : memref<32x512xf32, #tpu.memory_space<vmem>>, vector<3x512xf32>
    tpu.vector_store %arg4[%c3, %c0_5], %4 {strides = array<i32>} : memref<32x512xf32, #tpu.memory_space<vmem>>, vector<3x512xf32>,
    %c510_i32 = arith.constant 510 : i32
    %6 = tpu.dynamic_rotate %0 by %c510_i32 dim 1 : vector<3x512xf32>, i32 -> vector<3x512xf32>
    %c6 = arith.constant 6 : index
    %c0_6 = arith.constant 0 : index
    %7 = vector.load %arg4[%c6, %c0_6] : memref<32x512xf32, #tpu.memory_space<vmem>>, vector<3x512xf32>
    tpu.vector_store %arg4[%c6, %c0_6], %6 {strides = array<i32>} : memref<32x512xf32, #tpu.memory_space<vmem>>, vector<3x512xf32>,
    %c496_i32 = arith.constant 496 : i32
    %8 = tpu.dynamic_rotate %0 by %c496_i32 dim 1 : vector<3x512xf32>, i32 -> vector<3x512xf32>
    %c9 = arith.constant 9 : index
    %c0_7 = arith.constant 0 : index
    %9 = vector.load %arg4[%c9, %c0_7] : memref<32x512xf32, #tpu.memory_space<vmem>>, vector<3x512xf32>
    tpu.vector_store %arg4[%c9, %c0_7], %8 {strides = array<i32>} : memref<32x512xf32, #tpu.memory_space<vmem>>, vector<3x512xf32>,
    %c495_i32 = arith.constant 495 : i32
    %10 = tpu.dynamic_rotate %0 by %c495_i32 dim 1 : vector<3x512xf32>, i32 -> vector<3x512xf32>
    %c12 = arith.constant 12 : index
    %c0_8 = arith.constant 0 : index
    %11 = vector.load %arg4[%c12, %c0_8] : memref<32x512xf32, #tpu.memory_space<vmem>>, vector<3x512xf32>
    tpu.vector_store %arg4[%c12, %c0_8], %10 {strides = array<i32>} : memref<32x512xf32, #tpu.memory_space<vmem>>, vector<3x512xf32>,
    %c494_i32 = arith.constant 494 : i32
    %12 = tpu.dynamic_rotate %0 by %c494_i32 dim 1 : vector<3x512xf32>, i32 -> vector<3x512xf32>
    %c15 = arith.constant 15 : index
    %c0_9 = arith.constant 0 : index
    %13 = vector.load %arg4[%c15, %c0_9] : memref<32x512xf32, #tpu.memory_space<vmem>>, vector<3x512xf32>
    tpu.vector_store %arg4[%c15, %c0_9], %12 {strides = array<i32>} : memref<32x512xf32, #tpu.memory_space<vmem>>, vector<3x512xf32>,
    %c480_i32 = arith.constant 480 : i32
    %14 = tpu.dynamic_rotate %0 by %c480_i32 dim 1 : vector<3x512xf32>, i32 -> vector<3x512xf32>
    %c18 = arith.constant 18 : index
    %c0_10 = arith.constant 0 : index
    %15 = vector.load %arg4[%c18, %c0_10] : memref<32x512xf32, #tpu.memory_space<vmem>>, vector<3x512xf32>
    tpu.vector_store %arg4[%c18, %c0_10], %14 {strides = array<i32>} : memref<32x512xf32, #tpu.memory_space<vmem>>, vector<3x512xf32>,
    %c479_i32 = arith.constant 479 : i32
    %16 = tpu.dynamic_rotate %0 by %c479_i32 dim 1 : vector<3x512xf32>, i32 -> vector<3x512xf32>
    %c21 = arith.constant 21 : index
    %c0_11 = arith.constant 0 : index
    %17 = vector.load %arg4[%c21, %c0_11] : memref<32x512xf32, #tpu.memory_space<vmem>>, vector<3x512xf32>
    tpu.vector_store %arg4[%c21, %c0_11], %16 {strides = array<i32>} : memref<32x512xf32, #tpu.memory_space<vmem>>, vector<3x512xf32>,
    %c478_i32 = arith.constant 478 : i32
    %18 = tpu.dynamic_rotate %0 by %c478_i32 dim 1 : vector<3x512xf32>, i32 -> vector<3x512xf32>
    %c24 = arith.constant 24 : index
    %c0_12 = arith.constant 0 : index
    %19 = vector.load %arg4[%c24, %c0_12] : memref<32x512xf32, #tpu.memory_space<vmem>>, vector<3x512xf32>
    tpu.vector_store %arg4[%c24, %c0_12], %18 {strides = array<i32>} : memref<32x512xf32, #tpu.memory_space<vmem>>, vector<3x512xf32>,
    %c0_13 = arith.constant 0 : index
    %c0_14 = arith.constant 0 : index
    %20 = vector.load %arg1[%c0_13, %c0_14] : memref<6x32xf32, #tpu.memory_space<vmem>>, vector<6x32xf32>
    %c0_15 = arith.constant 0 : index
    %c0_16 = arith.constant 0 : index
    %21 = vector.load %arg4[%c0_15, %c0_16] : memref<32x512xf32, #tpu.memory_space<vmem>>, vector<32x512xf32>
    %cst_17 = arith.constant dense<0.000000e+00> : vector<6x512xf32>
    %22 = tpu.matmul %20, %21, %cst_17 {dimension_numbers = #tpu.dot_dimension_numbers<[1], [0], [0], [1], [0, 0, 1, 1], [], []>} : vector<6x32xf32>, vector<32x512xf32>, vector<6x512xf32> -> vector<6x512xf32>
    %c0_18 = arith.constant 0 : index
    %c0_19 = arith.constant 0 : index
    %23 = vector.load %arg2[%c0_18, %c0_19] : memref<6x1xf32, #tpu.memory_space<vmem>>, vector<6x1xf32>
    %24 = vector.broadcast %23 : vector<6x1xf32> to vector<6x512xf32>
    %25 = arith.addf %22, %24 : vector<6x512xf32>
    %26 = vector.extract_strided_slice %25 {offsets = [0, 0], sizes = [6, 256], strides = [1, 1]} : vector<6x512xf32> to vector<6x256xf32>
    %c0_20 = arith.constant 0 : index
    %c0_21 = arith.constant 0 : index
    %c0_22 = arith.constant 0 : index
    %27 = vector.load %arg3[%c0_20, %c0_21, %c0_22] : memref<2x6x256xf32, #tpu.memory_space<vmem>>, vector<1x6x256xf32>
    %28 = vector.shape_cast %27 : vector<1x6x256xf32> to vector<6x256xf32>
    %29 = vector.shape_cast %26 : vector<6x256xf32> to vector<1x6x256xf32>
    tpu.vector_store %arg3[%c0_20, %c0_21, %c0_22], %29 {strides = array<i32>} : memref<2x6x256xf32, #tpu.memory_space<vmem>>, vector<1x6x256xf32>,
    %30 = vector.extract_strided_slice %25 {offsets = [0, 256], sizes = [6, 256], strides = [1, 1]} : vector<6x512xf32> to vector<6x256xf32>
    %c1 = arith.constant 1 : index
    %c0_23 = arith.constant 0 : index
    %c0_24 = arith.constant 0 : index
    %31 = vector.load %arg3[%c1, %c0_23, %c0_24] : memref<2x6x256xf32, #tpu.memory_space<vmem>>, vector<1x6x256xf32>
    %32 = vector.shape_cast %31 : vector<1x6x256xf32> to vector<6x256xf32>
    %33 = vector.shape_cast %30 : vector<6x256xf32> to vector<1x6x256xf32>
    tpu.vector_store %arg3[%c1, %c0_23, %c0_24], %33 {strides = array<i32>} : memref<2x6x256xf32, #tpu.memory_space<vmem>>, vector<1x6x256xf32>,
    return
  }
}

</mosaic_0001>

<llo_original>
// kernel: conv2d_pallas.1
$region0: #{conv2d_pallas.1}
  #allocation0 [shape = 'u32[]', space=smem, size = 0x4, offset = 0x4, fixed_abs, tag = 'smem constant byte address 0x4 - core index']
  #allocation1 [shape = 'u32[72,128]{1,0:T(1,128)}', space=vmem, size = 0x9000, scoped, tag = 'internal scratch']
  #allocation2 [shape = 'f32[32,512]{1,0:T(8,128)}', space=vmem, size = 0x10000, scoped, tag = 'scratch operand']
  %s0 = inlined_call_operand.vmem [shape: f32[3,512], index: 0, kind: input, shape index: {}]
  %s1 = inlined_call_operand.vmem [shape: f32[6,32], index: 1, kind: input, shape index: {}]
  %s2 = inlined_call_operand.vmem [shape: f32[6,1], index: 2, kind: input, shape index: {}]
  %s3 = inlined_call_operand.vmem [shape: f32[2,6,256], index: 3, kind: output, shape index: {}]
  %s4 = sld [smem:[#allocation0]]
  $region22: #{conv2d_pallas.1} parent=0
    _
  %s6 = ssub.s32 1, %s4
  %s7 = scalar_select 0, %s6, %s4
  // Predicated region
  $region2: #{conv2d_pallas.1} parent=0 // pred_check
    _
  $region3: #{conv2d_pallas.1} parent=0 // pred_check_branch
    %9 = sbr.rel (0) target = $region5
  $region4: #{conv2d_pallas.1} parent=0 // pred_region
    _
  $region5: #{conv2d_pallas.1} parent=0 // pred_fallthru
    _
  // Predicated region
  $region6: #{conv2d_pallas.1} parent=0 // pred_check
    _
  $region7: #{conv2d_pallas.1} parent=0 // pred_check_branch
    %11 = sbr.rel (0) target = $region9
  $region8: #{conv2d_pallas.1} parent=0 // pred_region
    _
  $region9: #{conv2d_pallas.1} parent=0 // pred_fallthru
    _
  // Predicated region
  $region10: #{conv2d_pallas.1} parent=0 // pred_check
    _
  $region11: #{conv2d_pallas.1} parent=0 // pred_check_branch
    %13 = sbr.rel (0) target = $region13
  $region12: #{conv2d_pallas.1} parent=0 // pred_region
    _
  $region13: #{conv2d_pallas.1} parent=0 // pred_fallthru
    _
  %v14 = vld [vmem:[%s0] sm:$0x77]
  %v15 = vld [vmem:[%s0 + $0x8] sm:$0x77]
  %16 = vst [vmem:[#allocation2] sm:$0xff] 0.0
  %17 = vst [vmem:[#allocation2 + $0x8] sm:$0xff] 0.0
  %18 = vst [vmem:[#allocation2 + $0x10] sm:$0xff] 0.0
  %19 = vst [vmem:[#allocation2 + $0x18] sm:$0xff] 0.0
  %20 = vst [vmem:[#allocation2 + $0x20] sm:$0xff] 0.0
  %21 = vst [vmem:[#allocation2 + $0x28] sm:$0xff] 0.0
  %22 = vst [vmem:[#allocation2 + $0x30] sm:$0xff] 0.0
  %23 = vst [vmem:[#allocation2 + $0x38] sm:$0xff] 0.0
  %24 = vst [vmem:[#allocation2 + $0x40] sm:$0xff] 0.0
  %25 = vst [vmem:[#allocation2 + $0x48] sm:$0xff] 0.0
  %26 = vst [vmem:[#allocation2 + $0x50] sm:$0xff] 0.0
  %27 = vst [vmem:[#allocation2 + $0x58] sm:$0xff] 0.0
  %28 = vst [vmem:[#allocation2 + $0x60] sm:$0xff] 0.0
  %29 = vst [vmem:[#allocation2 + $0x68] sm:$0xff] 0.0
  %30 = vst [vmem:[#allocation2 + $0x70] sm:$0xff] 0.0
  %31 = vst [vmem:[#allocation2 + $0x78] sm:$0xff] 0.0
  %34 = vst [vmem:[#allocation1] ss:$2 sm:$0xff] %v14
  %s35 = scalar_lea.vmem [#allocation1], 16
  %36 = vst [vmem:[%s35] ss:$2 sm:$0xff] %v15
  %v37 = vld.sshfl [vmem:[#allocation1] sm:$0xff pattern:$0x75316420]
  %v38 = vld.sshfl [vmem:[#allocation1 + $0x8] sm:$0xff pattern:$0x75316420]
  %v39 = vld.sshfl [vmem:[#allocation1 + $0x10] sm:$0xff pattern:$0x75316420]
  %v40 = vld.sshfl [vmem:[#allocation1 + $0x18] sm:$0xff pattern:$0x75316420]
  %45 = vst [vmem:[#allocation2] sm:$0x7] %v37
  %46 = vst [vmem:[#allocation2 + $0x8] sm:$0x7] %v38
  %47 = vst [vmem:[#allocation2 + $0x10] sm:$0x7] %v39
  %48 = vst [vmem:[#allocation2 + $0x18] sm:$0x7] %v40
  %49 = vst [vmem:[#allocation1] ss:$2 sm:$0xff] %v14
  %s50 = scalar_lea.vmem [#allocation1], 16
  %51 = vst [vmem:[%s50] ss:$2 sm:$0xff] %v15
  %v52 = vld.sshfl [vmem:[#allocation1] sm:$0xff pattern:$0x75316420]
  %v53 = vld.sshfl [vmem:[#allocation1 + $0x8] sm:$0xff pattern:$0x75316420]
  %v54 = vld.sshfl [vmem:[#allocation1 + $0x10] sm:$0xff pattern:$0x75316420]
  %v55 = vld.sshfl [vmem:[#allocation1 + $0x18] sm:$0xff pattern:$0x75316420]
  %60 = vrot.lane.b32.xlu0 %v52, 127
  %v61 = vpop.permute.xlu0 %60
  %62 = vrot.lane.b32.xlu0 %v53, 127
  %v63 = vpop.permute.xlu0 %62
  %64 = vrot.lane.b32.xlu0 %v54, 127
  %v65 = vpop.permute.xlu0 %64
  %66 = vrot.lane.b32.xlu0 %v55, 127
  %v67 = vpop.permute.xlu0 %66
  %v68 = vlaneseq
  %v69 = vand.u32 %v68, 127
  %vm70 = vcmp.lt.s32.totalorder %v69, 127
  %v71 = vsel %vm70, %v65, %v67
  %v72 = vsel %vm70, %v63, %v65
  %v73 = vsel %vm70, %v61, %v63
  %v74 = vsel %vm70, %v67, %v61
  %v79 = vrot.slane %v73, 5
  %v80 = vrot.slane %v72, 5
  %v81 = vrot.slane %v71, 5
  %v82 = vrot.slane %v74, 5
  %87 = vst [vmem:[#allocation2] sm:$0x38] %v79
  %88 = vst [vmem:[#allocation2 + $0x8] sm:$0x38] %v80
  %89 = vst [vmem:[#allocation2 + $0x10] sm:$0x38] %v81
  %90 = vst [vmem:[#allocation2 + $0x18] sm:$0x38] %v82
  %91 = vst [vmem:[#allocation1] ss:$2 sm:$0xff] %v14
  %s92 = scalar_lea.vmem [#allocation1], 16
  %93 = vst [vmem:[%s92] ss:$2 sm:$0xff] %v15
  %v94 = vld.sshfl [vmem:[#allocation1] sm:$0xff pattern:$0x75316420]
  %v95 = vld.sshfl [vmem:[#allocation1 + $0x8] sm:$0xff pattern:$0x75316420]
  %v96 = vld.sshfl [vmem:[#allocation1 + $0x10] sm:$0xff pattern:$0x75316420]
  %v97 = vld.sshfl [vmem:[#allocation1 + $0x18] sm:$0xff pattern:$0x75316420]
  %102 = vrot.lane.b32.xlu0 %v94, 126
  %v103 = vpop.permute.xlu0 %102
  %104 = vrot.lane.b32.xlu0 %v95, 126
  %v105 = vpop.permute.xlu0 %104
  %106 = vrot.lane.b32.xlu0 %v96, 126
  %v107 = vpop.permute.xlu0 %106
  %108 = vrot.lane.b32.xlu0 %v97, 126
  %v109 = vpop.permute.xlu0 %108
  %vm110 = vcmp.lt.s32.totalorder %v69, 126
  %v111 = vsel %vm110, %v107, %v109
  %v112 = vsel %vm110, %v105, %v107
  %v113 = vsel %vm110, %v103, %v105
  %v114 = vsel %vm110, %v109, %v103
  %v119 = vrot.slane %v113, 2
  %v120 = vrot.slane %v112, 2
  %v121 = vrot.slane %v111, 2
  %v122 = vrot.slane %v114, 2
  %127 = vst [vmem:[#allocation2] sm:$0xc0] %v119
  %128 = vst [vmem:[#allocation2 + $0x8] sm:$0xc0] %v120
  %129 = vst [vmem:[#allocation2 + $0x10] sm:$0xc0] %v121
  %130 = vst [vmem:[#allocation2 + $0x18] sm:$0xc0] %v122
  %131 = vst [vmem:[#allocation2 + $0x20] sm:$0x1] %v119
  %132 = vst [vmem:[#allocation2 + $0x28] sm:$0x1] %v120
  %133 = vst [vmem:[#allocation2 + $0x30] sm:$0x1] %v121
  %134 = vst [vmem:[#allocation2 + $0x38] sm:$0x1] %v122
  %135 = vst [vmem:[#allocation1] ss:$2 sm:$0xff] %v14
  %s136 = scalar_lea.vmem [#allocation1], 16
  %137 = vst [vmem:[%s136] ss:$2 sm:$0xff] %v15
  %v138 = vld.sshfl [vmem:[#allocation1] sm:$0xff pattern:$0x75316420]
  %v139 = vld.sshfl [vmem:[#allocation1 + $0x8] sm:$0xff pattern:$0x75316420]
  %v140 = vld.sshfl [vmem:[#allocation1 + $0x10] sm:$0xff pattern:$0x75316420]
  %v141 = vld.sshfl [vmem:[#allocation1 + $0x18] sm:$0xff pattern:$0x75316420]
  %146 = vrot.lane.b32.xlu0 %v138, 112
  %v147 = vpop.permute.xlu0 %146
  %148 = vrot.lane.b32.xlu0 %v139, 112
  %v149 = vpop.permute.xlu0 %148
  %150 = vrot.lane.b32.xlu0 %v140, 112
  %v151 = vpop.permute.xlu0 %150
  %152 = vrot.lane.b32.xlu0 %v141, 112
  %v153 = vpop.permute.xlu0 %152
  %vm154 = vcmp.lt.s32.totalorder %v69, 112
  %v155 = vsel %vm154, %v151, %v153
  %v156 = vsel %vm154, %v149, %v151
  %v157 = vsel %vm154, %v147, %v149
  %v158 = vsel %vm154, %v153, %v147
  %v163 = vrot.slane %v157, 7
  %v164 = vrot.slane %v156, 7
  %v165 = vrot.slane %v155, 7
  %v166 = vrot.slane %v158, 7
  %171 = vst [vmem:[#allocation2 + $0x20] sm:$0xe] %v163
  %172 = vst [vmem:[#allocation2 + $0x28] sm:$0xe] %v164
  %173 = vst [vmem:[#allocation2 + $0x30] sm:$0xe] %v165
  %174 = vst [vmem:[#allocation2 + $0x38] sm:$0xe] %v166
  %175 = vst [vmem:[#allocation1] ss:$2 sm:$0xff] %v14
  %s176 = scalar_lea.vmem [#allocation1], 16
  %177 = vst [vmem:[%s176] ss:$2 sm:$0xff] %v15
  %v178 = vld.sshfl [vmem:[#allocation1] sm:$0xff pattern:$0x75316420]
  %v179 = vld.sshfl [vmem:[#allocation1 + $0x8] sm:$0xff pattern:$0x75316420]
  %v180 = vld.sshfl [vmem:[#allocation1 + $0x10] sm:$0xff pattern:$0x75316420]
  %v181 = vld.sshfl [vmem:[#allocation1 + $0x18] sm:$0xff pattern:$0x75316420]
  %186 = vrot.lane.b32.xlu0 %v178, 111
  %v187 = vpop.permute.xlu0 %186
  %188 = vrot.lane.b32.xlu0 %v179, 111
  %v189 = vpop.permute.xlu0 %188
  %190 = vrot.lane.b32.xlu0 %v180, 111
  %v191 = vpop.permute.xlu0 %190
  %192 = vrot.lane.b32.xlu0 %v181, 111
  %v193 = vpop.permute.xlu0 %192
  %vm194 = vcmp.lt.s32.totalorder %v69, 111
  %v195 = vsel %vm194, %v191, %v193
  %v196 = vsel %vm194, %v189, %v191
  %v197 = vsel %vm194, %v187, %v189
  %v198 = vsel %vm194, %v193, %v187
  %v203 = vrot.slane %v197, 4
  %v204 = vrot.slane %v196, 4
  %v205 = vrot.slane %v195, 4
  %v206 = vrot.slane %v198, 4
  %211 = vst [vmem:[#allocation2 + $0x20] sm:$0x70] %v203
  %212 = vst [vmem:[#allocation2 + $0x28] sm:$0x70] %v204
  %213 = vst [vmem:[#allocation2 + $0x30] sm:$0x70] %v205
  %214 = vst [vmem:[#allocation2 + $0x38] sm:$0x70] %v206
  %215 = vst [vmem:[#allocation1] ss:$2 sm:$0xff] %v14
  %s216 = scalar_lea.vmem [#allocation1], 16
  %217 = vst [vmem:[%s216] ss:$2 sm:$0xff] %v15
  %v218 = vld.sshfl [vmem:[#allocation1] sm:$0xff pattern:$0x75316420]
  %v219 = vld.sshfl [vmem:[#allocation1 + $0x8] sm:$0xff pattern:$0x75316420]
  %v220 = vld.sshfl [vmem:[#allocation1 + $0x10] sm:$0xff pattern:$0x75316420]
  %v221 = vld.sshfl [vmem:[#allocation1 + $0x18] sm:$0xff pattern:$0x75316420]
  %226 = vrot.lane.b32.xlu0 %v218, 110
  %v227 = vpop.permute.xlu0 %226
  %228 = vrot.lane.b32.xlu0 %v219, 110
  %v229 = vpop.permute.xlu0 %228
  %230 = vrot.lane.b32.xlu0 %v220, 110
  %v231 = vpop.permute.xlu0 %230
  %232 = vrot.lane.b32.xlu0 %v221, 110
  %v233 = vpop.permute.xlu0 %232
  %vm234 = vcmp.lt.s32.totalorder %v69, 110
  %v235 = vsel %vm234, %v231, %v233
  %v236 = vsel %vm234, %v229, %v231
  %v237 = vsel %vm234, %v227, %v229
  %v238 = vsel %vm234, %v233, %v227
  %v243 = vrot.slane %v237, 1
  %v244 = vrot.slane %v236, 1
  %v245 = vrot.slane %v235, 1
  %v246 = vrot.slane %v238, 1
  %251 = vst [vmem:[#allocation2 + $0x20] sm:$0x80] %v243
  %252 = vst [vmem:[#allocation2 + $0x28] sm:$0x80] %v244
  %253 = vst [vmem:[#allocation2 + $0x30] sm:$0x80] %v245
  %254 = vst [vmem:[#allocation2 + $0x38] sm:$0x80] %v246
  %255 = vst [vmem:[#allocation2 + $0x40] sm:$0x3] %v243
  %256 = vst [vmem:[#allocation2 + $0x48] sm:$0x3] %v244
  %257 = vst [vmem:[#allocation2 + $0x50] sm:$0x3] %v245
  %258 = vst [vmem:[#allocation2 + $0x58] sm:$0x3] %v246
  %259 = vst [vmem:[#allocation1] ss:$2 sm:$0xff] %v14
  %s260 = scalar_lea.vmem [#allocation1], 16
  %261 = vst [vmem:[%s260] ss:$2 sm:$0xff] %v15
  %v262 = vld.sshfl [vmem:[#allocation1] sm:$0xff pattern:$0x75316420]
  %v263 = vld.sshfl [vmem:[#allocation1 + $0x8] sm:$0xff pattern:$0x75316420]
  %v264 = vld.sshfl [vmem:[#allocation1 + $0x10] sm:$0xff pattern:$0x75316420]
  %v265 = vld.sshfl [vmem:[#allocation1 + $0x18] sm:$0xff pattern:$0x75316420]
  %270 = vrot.lane.b32.xlu0 %v262, 96
  %v271 = vpop.permute.xlu0 %270
  %272 = vrot.lane.b32.xlu0 %v263, 96
  %v273 = vpop.permute.xlu0 %272
  %274 = vrot.lane.b32.xlu0 %v264, 96
  %v275 = vpop.permute.xlu0 %274
  %276 = vrot.lane.b32.xlu0 %v265, 96
  %v277 = vpop.permute.xlu0 %276
  %vm278 = vcmp.lt.s32.totalorder %v69, 96
  %v279 = vsel %vm278, %v275, %v277
  %v280 = vsel %vm278, %v273, %v275
  %v281 = vsel %vm278, %v271, %v273
  %v282 = vsel %vm278, %v277, %v271
  %v287 = vrot.slane %v281, 6
  %v288 = vrot.slane %v280, 6
  %v289 = vrot.slane %v279, 6
  %v290 = vrot.slane %v282, 6
  %295 = vst [vmem:[#allocation2 + $0x40] sm:$0x1c] %v287
  %296 = vst [vmem:[#allocation2 + $0x48] sm:$0x1c] %v288
  %297 = vst [vmem:[#allocation2 + $0x50] sm:$0x1c] %v289
  %298 = vst [vmem:[#allocation2 + $0x58] sm:$0x1c] %v290
  %299 = vst [vmem:[#allocation1] ss:$2 sm:$0xff] %v14
  %s300 = scalar_lea.vmem [#allocation1], 16
  %301 = vst [vmem:[%s300] ss:$2 sm:$0xff] %v15
  %v302 = vld.sshfl [vmem:[#allocation1] sm:$0xff pattern:$0x75316420]
  %v303 = vld.sshfl [vmem:[#allocation1 + $0x8] sm:$0xff pattern:$0x75316420]
  %v304 = vld.sshfl [vmem:[#allocation1 + $0x10] sm:$0xff pattern:$0x75316420]
  %v305 = vld.sshfl [vmem:[#allocation1 + $0x18] sm:$0xff pattern:$0x75316420]
  %310 = vrot.lane.b32.xlu0 %v302, 95
  %v311 = vpop.permute.xlu0 %310
  %312 = vrot.lane.b32.xlu0 %v303, 95
  %v313 = vpop.permute.xlu0 %312
  %314 = vrot.lane.b32.xlu0 %v304, 95
  %v315 = vpop.permute.xlu0 %314
  %316 = vrot.lane.b32.xlu0 %v305, 95
  %v317 = vpop.permute.xlu0 %316
  %vm318 = vcmp.lt.s32.totalorder %v69, 95
  %v319 = vsel %vm318, %v315, %v317
  %v320 = vsel %vm318, %v313, %v315
  %v321 = vsel %vm318, %v311, %v313
  %v322 = vsel %vm318, %v317, %v311
  %v327 = vrot.slane %v321, 3
  %v328 = vrot.slane %v320, 3
  %v329 = vrot.slane %v319, 3
  %v330 = vrot.slane %v322, 3
  %335 = vst [vmem:[#allocation2 + $0x40] sm:$0xe0] %v327
  %336 = vst [vmem:[#allocation2 + $0x48] sm:$0xe0] %v328
  %337 = vst [vmem:[#allocation2 + $0x50] sm:$0xe0] %v329
  %338 = vst [vmem:[#allocation2 + $0x58] sm:$0xe0] %v330
  %339 = vst [vmem:[#allocation1] ss:$2 sm:$0xff] %v14
  %s340 = scalar_lea.vmem [#allocation1], 16
  %341 = vst [vmem:[%s340] ss:$2 sm:$0xff] %v15
  %v342 = vld.sshfl [vmem:[#allocation1] sm:$0xff pattern:$0x75316420]
  %v343 = vld.sshfl [vmem:[#allocation1 + $0x8] sm:$0xff pattern:$0x75316420]
  %v344 = vld.sshfl [vmem:[#allocation1 + $0x10] sm:$0xff pattern:$0x75316420]
  %v345 = vld.sshfl [vmem:[#allocation1 + $0x18] sm:$0xff pattern:$0x75316420]
  %350 = vrot.lane.b32.xlu0 %v342, 94
  %v351 = vpop.permute.xlu0 %350
  %352 = vrot.lane.b32.xlu0 %v343, 94
  %v353 = vpop.permute.xlu0 %352
  %354 = vrot.lane.b32.xlu0 %v344, 94
  %v355 = vpop.permute.xlu0 %354
  %356 = vrot.lane.b32.xlu0 %v345, 94
  %v357 = vpop.permute.xlu0 %356
  %vm358 = vcmp.lt.s32.totalorder %v69, 94
  %v359 = vsel %vm358, %v355, %v357
  %v360 = vsel %vm358, %v353, %v355
  %v361 = vsel %vm358, %v351, %v353
  %v362 = vsel %vm358, %v357, %v351
  %363 = vst [vmem:[#allocation2 + $0x60] sm:$0x7] %v361
  %364 = vst [vmem:[#allocation2 + $0x68] sm:$0x7] %v360
  %365 = vst [vmem:[#allocation2 + $0x70] sm:$0x7] %v359
  %366 = vst [vmem:[#allocation2 + $0x78] sm:$0x7] %v362
  %v367 = vld [vmem:[%s1] sm:$0x3f]
  %v368 = vld [vmem:[#allocation2] sm:$0xff]
  %v369 = vld [vmem:[#allocation2 + $0x8] sm:$0xff]
  %v370 = vld [vmem:[#allocation2 + $0x10] sm:$0xff]
  %v371 = vld [vmem:[#allocation2 + $0x18] sm:$0xff]
  %v372 = vld [vmem:[#allocation2 + $0x20] sm:$0xff]
  %v373 = vld [vmem:[#allocation2 + $0x28] sm:$0xff]
  %v374 = vld [vmem:[#allocation2 + $0x30] sm:$0xff]
  %v375 = vld [vmem:[#allocation2 + $0x38] sm:$0xff]
  %v376 = vld [vmem:[#allocation2 + $0x40] sm:$0xff]
  %v377 = vld [vmem:[#allocation2 + $0x48] sm:$0xff]
  %v378 = vld [vmem:[#allocation2 + $0x50] sm:$0xff]
  %v379 = vld [vmem:[#allocation2 + $0x58] sm:$0xff]
  %v380 = vld [vmem:[#allocation2 + $0x60] sm:$0xff]
  %v381 = vld [vmem:[#allocation2 + $0x68] sm:$0xff]
  %v382 = vld [vmem:[#allocation2 + $0x70] sm:$0xff]
  %v383 = vld [vmem:[#allocation2 + $0x78] sm:$0xff]
  %v384 = vld [vmem:[%s2] sm:$0x3f]
  %386 = vset.pattern.permute.xlu0 0
  %387 = vperm.xlu0 %386, %v384
  %v388 = vpop.permute.xlu0 %387
  %vm390 = vcmask 261120
  %v392 = vsel %vm390, %v367, 0
  %394 = vmatpush.msra.mxu0 0.0
  %395 = vmatpush.msra.mxu0 0.0
  %396 = vmatpush.msra.mxu0 0.0
  %397 = vmatpush.msra.mxu0 0.0
  %398 = vmatpush.msra.mxu0 0.0
  %399 = vmatpush.msra.mxu0 0.0
  %400 = vmatpush.msra.mxu0 0.0
  %401 = vmatpush.msra.mxu0 0.0
  %402 = vmatpush.msra.mxu0 0.0
  %403 = vmatpush.msra.mxu0 0.0
  %404 = vmatpush.msra.mxu0 0.0
  %405 = vmatpush.msra.mxu0 0.0
  %406 = vmatpush.msra.mxu0 %v380
  %407 = vmatpush.msra.mxu0 %v376
  %408 = vmatpush.msra.mxu0 %v372
  %409 = vmatpush.msra.mxu0 %v368
  %410 = vmatmul.f32.gmra.mxu0 %v392
  %v411 = vpop.f32.mrf.mxu0
  %v412 = vadd.f32 %v388, %v411
  %413 = vdwg.mxu0
  %414 = vmatpush.msra.mxu0 0.0
  %415 = vmatpush.msra.mxu0 0.0
  %416 = vmatpush.msra.mxu0 0.0
  %417 = vmatpush.msra.mxu0 0.0
  %418 = vmatpush.msra.mxu0 0.0
  %419 = vmatpush.msra.mxu0 0.0
  %420 = vmatpush.msra.mxu0 0.0
  %421 = vmatpush.msra.mxu0 0.0
  %422 = vmatpush.msra.mxu0 0.0
  %423 = vmatpush.msra.mxu0 0.0
  %424 = vmatpush.msra.mxu0 0.0
  %425 = vmatpush.msra.mxu0 0.0
  %426 = vmatpush.msra.mxu0 %v381
  %427 = vmatpush.msra.mxu0 %v377
  %428 = vmatpush.msra.mxu0 %v373
  %429 = vmatpush.msra.mxu0 %v369
  %430 = vmatmul.f32.gmra.mxu0 %v392
  %v431 = vpop.f32.mrf.mxu0
  %v432 = vadd.f32 %v388, %v431
  %433 = vdwg.mxu0
  %434 = vmatpush.msra.mxu0 0.0
  %435 = vmatpush.msra.mxu0 0.0
  %436 = vmatpush.msra.mxu0 0.0
  %437 = vmatpush.msra.mxu0 0.0
  %438 = vmatpush.msra.mxu0 0.0
  %439 = vmatpush.msra.mxu0 0.0
  %440 = vmatpush.msra.mxu0 0.0
  %441 = vmatpush.msra.mxu0 0.0
  %442 = vmatpush.msra.mxu0 0.0
  %443 = vmatpush.msra.mxu0 0.0
  %444 = vmatpush.msra.mxu0 0.0
  %445 = vmatpush.msra.mxu0 0.0
  %446 = vmatpush.msra.mxu0 %v382
  %447 = vmatpush.msra.mxu0 %v378
  %448 = vmatpush.msra.mxu0 %v374
  %449 = vmatpush.msra.mxu0 %v370
  %450 = vmatmul.f32.gmra.mxu0 %v392
  %v451 = vpop.f32.mrf.mxu0
  %v452 = vadd.f32 %v388, %v451
  %453 = vdwg.mxu0
  %454 = vmatpush.msra.mxu0 0.0
  %455 = vmatpush.msra.mxu0 0.0
  %456 = vmatpush.msra.mxu0 0.0
  %457 = vmatpush.msra.mxu0 0.0
  %458 = vmatpush.msra.mxu0 0.0
  %459 = vmatpush.msra.mxu0 0.0
  %460 = vmatpush.msra.mxu0 0.0
  %461 = vmatpush.msra.mxu0 0.0
  %462 = vmatpush.msra.mxu0 0.0
  %463 = vmatpush.msra.mxu0 0.0
  %464 = vmatpush.msra.mxu0 0.0
  %465 = vmatpush.msra.mxu0 0.0
  %466 = vmatpush.msra.mxu0 %v383
  %467 = vmatpush.msra.mxu0 %v379
  %468 = vmatpush.msra.mxu0 %v375
  %469 = vmatpush.msra.mxu0 %v371
  %470 = vmatmul.f32.gmra.mxu0 %v392
  %v471 = vpop.f32.mrf.mxu0
  %v472 = vadd.f32 %v388, %v471
  %473 = vdwg.mxu0
  %474 = vst [vmem:[%s3] sm:$0x3f] %v412
  %475 = vst [vmem:[%s3 + $0x8] sm:$0x3f] %v432
  %s476 = scalar_lea.vmem %s3, 16
  %477 = vst [vmem:[%s476] sm:$0x3f] %v452
  %478 = vst [vmem:[%s476 + $0x8] sm:$0x3f] %v472
  // Predicated region
  $region14: #{conv2d_pallas.1} parent=0 // pred_check
    _
  $region15: #{conv2d_pallas.1} parent=0 // pred_check_branch
    %480 = sbr.rel (0) target = $region17
  $region16: #{conv2d_pallas.1} parent=0 // pred_region
    _
  $region17: #{conv2d_pallas.1} parent=0 // pred_fallthru
    _
  // Predicated region
  $region18: #{conv2d_pallas.1} parent=0 // pred_check
    _
  $region19: #{conv2d_pallas.1} parent=0 // pred_check_branch
    %482 = sbr.rel (0) target = $region21
  $region20: #{conv2d_pallas.1} parent=0 // pred_region
    _
  $region21: #{conv2d_pallas.1} parent=0 // pred_fallthru
    _

</llo_original>
